<compile_context>
chip_gen: v7x
topology: tpu7x:2x2x1
jax: 0.10.0
libtpu: 0.0.40
codegen_flags: <defaults>
</compile_context>

<pallas_src>
import functools

import jax
import jax.numpy as jnp
import numpy as np
from jax.experimental import pallas as pl
from jax.experimental.pallas import tpu as pltpu


def _softplus(x):
    # numerically stable softplus (matches torch.nn.Softplus default)
    return jnp.maximum(x, 0.0) + jnp.log1p(jnp.exp(-jnp.abs(x)))


def _round128(n):
    return ((n + 127) // 128) * 128


def _decoder_ts_seq_kernel(
    # inputs
    xtf_ref,     # (1, B, Kmax)   zero-padded concat([x_t, tf_t]) for step t
    h0_ref,      # (B, 2h)        initial hidden (resident)
    w_ref,       # (Kmax, Ctot)   packed weight slab (resident)
    b_ref,       # (1, Ctot)      packed bias row (resident)
    # outputs
    musd_ref,    # (1, B, 2*x_dim)  [x_mu | x_std] for step t
    hlast_ref,   # (B, 2h)          final hidden (resident, flushed at end)
    # scratch
    h_scr,       # (B, 2h)          carried hidden state
    *, x_dim, h_dim, offs, bound,
):
    f32 = jnp.float32
    H2 = 2 * h_dim          # GRU hidden size
    H6 = 3 * H2             # 3 gates
    oJ, oIH, oHH, oM1, oM2, oS = offs

    t = pl.program_id(0)

    @pl.when(t == 0)
    def _init():
        h_scr[...] = h0_ref[...]

    xtf = xtf_ref[0]        # (B, Kmax)
    h = h_scr[...]          # (B, 2h)

    # --- fused phi_x / phi_tf : one block-diagonal Linear + ReLU ------------
    w_j = w_ref[:, oJ:oJ + H2]                          # (Kmax, 2h)
    joint = jnp.maximum(
        jnp.dot(xtf, w_j, preferred_element_type=f32) + b_ref[:, oJ:oJ + H2],
        0.0)                                            # (B, 2h) = [x_h | tf_h]

    # --- GRUCell(2h -> 2h) ----------------------------------------------------
    w_ih = w_ref[0:H2, oIH:oIH + H6]
    w_hh = w_ref[0:H2, oHH:oHH + H6]
    gi = jnp.dot(joint, w_ih, preferred_element_type=f32) + b_ref[:, oIH:oIH + H6]
    gh = jnp.dot(h,     w_hh, preferred_element_type=f32) + b_ref[:, oHH:oHH + H6]

    r = jax.nn.sigmoid(gi[:, 0:H2] + gh[:, 0:H2])
    z = jax.nn.sigmoid(gi[:, H2:2 * H2] + gh[:, H2:2 * H2])
    n = jnp.tanh(gi[:, 2 * H2:3 * H2] + r * gh[:, 2 * H2:3 * H2])
    h_new = (1.0 - z) * n + z * h

    # --- dec_mean: Linear(2h, h) -> ReLU -> Linear(h, x_dim) -------------------
    w_m1 = w_ref[0:H2, oM1:oM1 + h_dim]
    w_m2 = w_ref[0:h_dim, oM2:oM2 + x_dim]
    m1 = jnp.maximum(
        jnp.dot(h_new, w_m1, preferred_element_type=f32) + b_ref[:, oM1:oM1 + h_dim],
        0.0)
    x_mu = jnp.dot(m1, w_m2, preferred_element_type=f32) + b_ref[:, oM2:oM2 + x_dim]

    # --- dec_std: Linear(2h, x_dim) -> Softplus, then + bound -------------------
    w_s = w_ref[0:H2, oS:oS + x_dim]
    s = jnp.dot(h_new, w_s, preferred_element_type=f32) + b_ref[:, oS:oS + x_dim]
    x_std = _softplus(s) + bound

    # --- writebacks --------------------------------------------------------------
    musd_ref[0] = jnp.concatenate([x_mu, x_std], axis=-1)   # merged lane-denser out
    h_scr[...] = h_new
    hlast_ref[...] = h_new


def pack_decoder_params(params, *, x_dim, tf_dim, h_dim):
    """Pack all weights into one slab (128-aligned column blocks) + one bias row."""
    H2, H, H6 = 2 * h_dim, h_dim, 6 * h_dim
    Kin = x_dim + tf_dim
    Kmax = max(Kin, H2)

    widths = (H2, H6, H6, H, x_dim, x_dim)   # joint, ih, hh, m1, m2, s
    offs, c = [], 0
    for w in widths:
        offs.append(c)
        c += _round128(w)
    tot_c = c

    w_slab = jnp.zeros((Kmax, tot_c), jnp.float32)
    b_slab = jnp.zeros((1, tot_c), jnp.float32)
    oJ, oIH, oHH, oM1, oM2, oS = offs

    # block-diag([wx, wtf]) for the fused phi layer
    w_slab = w_slab.at[:x_dim, oJ:oJ + H].set(params["wx"])
    w_slab = w_slab.at[x_dim:Kin, oJ + H:oJ + H2].set(params["wtf"])
    b_slab = b_slab.at[:, oJ:oJ + H2].set(
        jnp.concatenate([params["bx"], params["btf"]], axis=-1))

    w_slab = w_slab.at[:H2, oIH:oIH + H6].set(params["wih"])
    b_slab = b_slab.at[:, oIH:oIH + H6].set(params["bih"])
    w_slab = w_slab.at[:H2, oHH:oHH + H6].set(params["whh"])
    b_slab = b_slab.at[:, oHH:oHH + H6].set(params["bhh"])
    w_slab = w_slab.at[:H2, oM1:oM1 + H].set(params["wm1"])
    b_slab = b_slab.at[:, oM1:oM1 + H].set(params["bm1"])
    w_slab = w_slab.at[:H, oM2:oM2 + x_dim].set(params["wm2"])
    b_slab = b_slab.at[:, oM2:oM2 + x_dim].set(params["bm2"])
    w_slab = w_slab.at[:H2, oS:oS + x_dim].set(params["ws"])
    b_slab = b_slab.at[:, oS:oS + x_dim].set(params["bs"])

    return w_slab, b_slab, tuple(offs), Kmax


def decoder_ts_forward_seq(x_seq, tf_seq, hidden0, params, *, h_dim, bound=0.05):
    """Run Decoder_TS.forward for T consecutive steps inside one pallas_call.

    x_seq: (T, B, x_dim), tf_seq: (T, B, tf_dim), hidden0: (B, 2*h_dim)
    Returns (x_mu_seq, x_std_seq, h_last).
    """
    T, B, x_dim = x_seq.shape
    tf_dim = tf_seq.shape[-1]
    H2 = 2 * h_dim

    w_slab, b_slab, offs, Kmax = pack_decoder_params(
        params, x_dim=x_dim, tf_dim=tf_dim, h_dim=h_dim)

    # concat x / tf along features, zero-pad lanes to Kmax (matches slab rows)
    xtf = jnp.concatenate([x_seq, tf_seq], axis=-1).astype(jnp.float32)
    xtf = jnp.pad(xtf, ((0, 0), (0, 0), (0, Kmax - (x_dim + tf_dim))))

    kernel = functools.partial(
        _decoder_ts_seq_kernel, x_dim=x_dim, h_dim=h_dim, offs=offs, bound=bound)

    resident = lambda t: (0, 0)
    out_shapes = (
        jax.ShapeDtypeStruct((T, B, 2 * x_dim), jnp.float32),   # [mu | std] per step
        jax.ShapeDtypeStruct((B, H2), jnp.float32),             # final hidden
    )

    musd, h_last = pl.pallas_call(
        kernel,
        out_shape=out_shapes,
        grid=(T,),
        in_specs=[
            pl.BlockSpec((1, B, Kmax), lambda t: (t, 0, 0)),    # streamed per step
            pl.BlockSpec((B, H2), resident),                    # h0 (loaded once)
            pl.BlockSpec(w_slab.shape, resident),               # weight slab (resident)
            pl.BlockSpec(b_slab.shape, resident),               # bias row (resident)
        ],
        out_specs=[
            pl.BlockSpec((1, B, 2 * x_dim), lambda t: (t, 0, 0)),
            pl.BlockSpec((B, H2), resident),
        ],
        scratch_shapes=[pltpu.VMEM((B, H2), jnp.float32)],
        compiler_params=pltpu.CompilerParams(
            dimension_semantics=("arbitrary",)),                 # sequential recurrence
    )(xtf, hidden0.astype(jnp.float32), w_slab, b_slab)

    return musd[:, :, :x_dim], musd[:, :, x_dim:], h_last


def decoder_ts_forward(x_t, tf_t, hidden, params, *, h_dim, bound=0.05):
    """Single-step forward matching Decoder_TS.forward (returns mu, std, new hidden)."""
    mu, std, h = decoder_ts_forward_seq(
        x_t[None], tf_t[None], hidden, params, h_dim=h_dim, bound=bound)
    return mu[0], std[0], h


def _make_params(key, x_dim, tf_dim, h_dim):
    """Deterministic synthetic parameters (stored transposed for y = x @ W + b)."""
    ks = jax.random.split(key, 12)
    H2, H = 2 * h_dim, h_dim

    def w(k, shape, scale=0.1):
        return (scale * jax.random.normal(k, shape)).astype(jnp.float32)

    return dict(
        wx=w(ks[0], (x_dim, H)),    bx=w(ks[1], (1, H)),
        wtf=w(ks[2], (tf_dim, H)),  btf=w(ks[3], (1, H)),
        wih=w(ks[4], (H2, 3 * H2)), bih=w(ks[5], (1, 3 * H2)),
        whh=w(ks[6], (H2, 3 * H2)), bhh=w(ks[7], (1, 3 * H2)),
        wm1=w(ks[8], (H2, H)),      bm1=w(ks[9], (1, H)),
        wm2=w(ks[10], (H, x_dim)),  bm2=jnp.zeros((1, x_dim), jnp.float32),
        ws=w(ks[11], (H2, x_dim)),  bs=jnp.zeros((1, x_dim), jnp.float32),
    )


def _reference_forward_seq(x_seq, tf_seq, h0, p, h_dim, bound):
    """Pure-JAX reference matching PyTorch GRUCell / Linear / Softplus semantics."""
    H2 = 2 * h_dim
    h = h0
    mus, stds = [], []
    for t in range(x_seq.shape[0]):
        x_h = jnp.maximum(x_seq[t] @ p["wx"] + p["bx"], 0.0)
        tf_h = jnp.maximum(tf_seq[t] @ p["wtf"] + p["btf"], 0.0)
        joint = jnp.concatenate([x_h, tf_h], axis=-1)
        gi = joint @ p["wih"] + p["bih"]
        gh = h @ p["whh"] + p["bhh"]
        r = jax.nn.sigmoid(gi[:, :H2] + gh[:, :H2])
        z = jax.nn.sigmoid(gi[:, H2:2 * H2] + gh[:, H2:2 * H2])
        n = jnp.tanh(gi[:, 2 * H2:] + r * gh[:, 2 * H2:])
        h = (1.0 - z) * n + z * h
        x_mu = jnp.maximum(h @ p["wm1"] + p["bm1"], 0.0) @ p["wm2"] + p["bm2"]
        x_std = jax.nn.softplus(h @ p["ws"] + p["bs"]) + bound
        mus.append(x_mu)
        stds.append(x_std)
    return jnp.stack(mus), jnp.stack(stds), h


if __name__ == "__main__":
    T, B, x_dim, tf_dim, h_dim = 8, 8, 6, 4, 16
    bound = 0.05

    key = jax.random.PRNGKey(0)
    k_x, k_tf, k_h, k_p = jax.random.split(key, 4)

    x_seq = jax.random.normal(k_x, (T, B, x_dim), dtype=jnp.float32)
    tf_seq = jax.random.normal(k_tf, (T, B, tf_dim), dtype=jnp.float32)
    hidden0 = jax.random.normal(k_h, (B, 2 * h_dim), dtype=jnp.float32)
    params = _make_params(k_p, x_dim, tf_dim, h_dim)

    x_mu, x_std, h_last = decoder_ts_forward_seq(
        x_seq, tf_seq, hidden0, params, h_dim=h_dim, bound=bound)
    jax.block_until_ready((x_mu, x_std, h_last))

    # correctness check against pure-JAX reference (per-step mu/std + final hidden)
    r_mu, r_std, r_h = _reference_forward_seq(x_seq, tf_seq, hidden0, params, h_dim, bound)
    np.testing.assert_allclose(np.asarray(x_mu), np.asarray(r_mu), atol=1e-4, rtol=1e-4)
    np.testing.assert_allclose(np.asarray(x_std), np.asarray(r_std), atol=1e-4, rtol=1e-4)
    np.testing.assert_allclose(np.asarray(h_last), np.asarray(r_h), atol=1e-4, rtol=1e-4)

    print("KERNEL_OK")
</pallas_src>

<mosaic_0001>
module attributes {stable_mosaic.version = 11 : i64} {
  func.func @_decoder_ts_seq_kernel(%arg0: i32, %arg1: memref<1x8x32xf32, #tpu.memory_space<vmem>>, %arg2: memref<8x32xf32, #tpu.memory_space<vmem>>, %arg3: memref<32x768xf32, #tpu.memory_space<vmem>>, %arg4: memref<1x768xf32, #tpu.memory_space<vmem>>, %arg5: memref<1x8x12xf32, #tpu.memory_space<vmem>>, %arg6: memref<8x32xf32, #tpu.memory_space<vmem>>, %arg7: memref<8x32xf32, #tpu.memory_space<vmem>>) attributes {dimension_semantics = [#tpu.dimension_semantics<arbitrary>], iteration_bounds = array<i64: 8>, scalar_prefetch = 0 : i64, scratch_operands = 1 : i64, tpu.core_type = #tpu.core_type<tc>, window_params = [{transform_indices = @transform_0, window_bounds = array<i64: 1, 8, 32>}, {pipeline_mode = #tpu.pipeline_mode<synchronous>, transform_indices = @transform_1, window_bounds = array<i64: 8, 32>}, {pipeline_mode = #tpu.pipeline_mode<synchronous>, transform_indices = @transform_2, window_bounds = array<i64: 32, 768>}, {pipeline_mode = #tpu.pipeline_mode<synchronous>, transform_indices = @transform_3, window_bounds = array<i64: 1, 768>}, {transform_indices = @transform_4, window_bounds = array<i64: 1, 8, 12>}, {pipeline_mode = #tpu.pipeline_mode<synchronous>, transform_indices = @transform_5, window_bounds = array<i64: 8, 32>}]} {
    %c0_i32 = arith.constant 0 : i32
    %0 = arith.cmpi eq, %arg0, %c0_i32 : i32
    %1 = arith.extui %0 : i1 to i32
    %c0_i32_0 = arith.constant 0 : i32
    %2 = arith.cmpi ne, %1, %c0_i32_0 : i32
    scf.if %2 {
      %c0_44 = arith.constant 0 : index
      %c0_45 = arith.constant 0 : index
      %82 = vector.load %arg2[%c0_44, %c0_45] : memref<8x32xf32, #tpu.memory_space<vmem>>, vector<8x32xf32>
      %c0_46 = arith.constant 0 : index
      %c0_47 = arith.constant 0 : index
      %83 = vector.load %arg7[%c0_46, %c0_47] : memref<8x32xf32, #tpu.memory_space<vmem>>, vector<8x32xf32>
      tpu.vector_store %arg7[%c0_46, %c0_47], %82 {strides = array<i32>} : memref<8x32xf32, #tpu.memory_space<vmem>>, vector<8x32xf32>,
    } else {
    }
    %c0 = arith.constant 0 : index
    %c0_1 = arith.constant 0 : index
    %c0_2 = arith.constant 0 : index
    %3 = vector.load %arg1[%c0, %c0_1, %c0_2] : memref<1x8x32xf32, #tpu.memory_space<vmem>>, vector<1x8x32xf32>
    %4 = vector.shape_cast %3 : vector<1x8x32xf32> to vector<8x32xf32>
    %c0_3 = arith.constant 0 : index
    %c0_4 = arith.constant 0 : index
    %5 = vector.load %arg7[%c0_3, %c0_4] : memref<8x32xf32, #tpu.memory_space<vmem>>, vector<8x32xf32>
    %c0_5 = arith.constant 0 : index
    %c0_6 = arith.constant 0 : index
    %6 = vector.load %arg3[%c0_5, %c0_6] : memref<32x768xf32, #tpu.memory_space<vmem>>, vector<32x32xf32>
    %cst = arith.constant dense<0.000000e+00> : vector<8x32xf32>
    %7 = tpu.matmul %4, %6, %cst {dimension_numbers = #tpu.dot_dimension_numbers<[1], [0], [0], [1], [0, 0, 1, 1], [], []>} : vector<8x32xf32>, vector<32x32xf32>, vector<8x32xf32> -> vector<8x32xf32>
    %c0_7 = arith.constant 0 : index
    %c0_8 = arith.constant 0 : index
    %8 = vector.load %arg4[%c0_7, %c0_8] : memref<1x768xf32, #tpu.memory_space<vmem>>, vector<1x32xf32>
    %9 = vector.broadcast %8 : vector<1x32xf32> to vector<8x32xf32>
    %10 = arith.addf %7, %9 : vector<8x32xf32>
    %cst_9 = arith.constant 0.000000e+00 : f32
    %11 = vector.broadcast %cst_9 : f32 to vector<8x32xf32>
    %12 = arith.maximumf %10, %11 : vector<8x32xf32>
    %c0_10 = arith.constant 0 : index
    %c128 = arith.constant 128 : index
    %13 = vector.load %arg3[%c0_10, %c128] : memref<32x768xf32, #tpu.memory_space<vmem>>, vector<32x96xf32>
    %c0_11 = arith.constant 0 : index
    %c256 = arith.constant 256 : index
    %14 = vector.load %arg3[%c0_11, %c256] : memref<32x768xf32, #tpu.memory_space<vmem>>, vector<32x96xf32>
    %cst_12 = arith.constant dense<0.000000e+00> : vector<8x96xf32>
    %15 = tpu.matmul %12, %13, %cst_12 {dimension_numbers = #tpu.dot_dimension_numbers<[1], [0], [0], [1], [0, 0, 1, 1], [], []>} : vector<8x32xf32>, vector<32x96xf32>, vector<8x96xf32> -> vector<8x96xf32>
    %c0_13 = arith.constant 0 : index
    %c128_14 = arith.constant 128 : index
    %16 = vector.load %arg4[%c0_13, %c128_14] : memref<1x768xf32, #tpu.memory_space<vmem>>, vector<1x96xf32>
    %17 = vector.broadcast %16 : vector<1x96xf32> to vector<8x96xf32>
    %18 = arith.addf %15, %17 : vector<8x96xf32>
    %cst_15 = arith.constant dense<0.000000e+00> : vector<8x96xf32>
    %19 = tpu.matmul %5, %14, %cst_15 {dimension_numbers = #tpu.dot_dimension_numbers<[1], [0], [0], [1], [0, 0, 1, 1], [], []>} : vector<8x32xf32>, vector<32x96xf32>, vector<8x96xf32> -> vector<8x96xf32>
    %c0_16 = arith.constant 0 : index
    %c256_17 = arith.constant 256 : index
    %20 = vector.load %arg4[%c0_16, %c256_17] : memref<1x768xf32, #tpu.memory_space<vmem>>, vector<1x96xf32>
    %21 = vector.broadcast %20 : vector<1x96xf32> to vector<8x96xf32>
    %22 = arith.addf %19, %21 : vector<8x96xf32>
    %23 = vector.extract_strided_slice %18 {offsets = [0, 0], sizes = [8, 32], strides = [1, 1]} : vector<8x96xf32> to vector<8x32xf32>
    %24 = vector.extract_strided_slice %22 {offsets = [0, 0], sizes = [8, 32], strides = [1, 1]} : vector<8x96xf32> to vector<8x32xf32>
    %25 = arith.addf %23, %24 : vector<8x32xf32>
    %26 = arith.negf %25 : vector<8x32xf32>
    %27 = math.exp %26 : vector<8x32xf32>
    %cst_18 = arith.constant 1.000000e+00 : f32
    %28 = vector.broadcast %cst_18 : f32 to vector<8x32xf32>
    %29 = arith.addf %28, %27 : vector<8x32xf32>
    %30 = arith.divf %28, %29 : vector<8x32xf32>
    %31 = vector.extract_strided_slice %18 {offsets = [0, 32], sizes = [8, 32], strides = [1, 1]} : vector<8x96xf32> to vector<8x32xf32>
    %32 = vector.extract_strided_slice %22 {offsets = [0, 32], sizes = [8, 32], strides = [1, 1]} : vector<8x96xf32> to vector<8x32xf32>
    %33 = arith.addf %31, %32 : vector<8x32xf32>
    %34 = arith.negf %33 : vector<8x32xf32>
    %35 = math.exp %34 : vector<8x32xf32>
    %cst_19 = arith.constant 1.000000e+00 : f32
    %36 = vector.broadcast %cst_19 : f32 to vector<8x32xf32>
    %37 = arith.addf %36, %35 : vector<8x32xf32>
    %38 = arith.divf %36, %37 : vector<8x32xf32>
    %39 = vector.extract_strided_slice %18 {offsets = [0, 64], sizes = [8, 32], strides = [1, 1]} : vector<8x96xf32> to vector<8x32xf32>
    %40 = vector.extract_strided_slice %22 {offsets = [0, 64], sizes = [8, 32], strides = [1, 1]} : vector<8x96xf32> to vector<8x32xf32>
    %41 = arith.mulf %30, %40 : vector<8x32xf32>
    %42 = arith.addf %39, %41 : vector<8x32xf32>
    %43 = math.tanh %42 : vector<8x32xf32>
    %cst_20 = arith.constant 1.000000e+00 : f32
    %44 = vector.broadcast %cst_20 : f32 to vector<8x32xf32>
    %45 = arith.subf %44, %38 : vector<8x32xf32>
    %46 = arith.mulf %45, %43 : vector<8x32xf32>
    %47 = arith.mulf %38, %5 : vector<8x32xf32>
    %48 = arith.addf %46, %47 : vector<8x32xf32>
    %c0_21 = arith.constant 0 : index
    %c384 = arith.constant 384 : index
    %49 = vector.load %arg3[%c0_21, %c384] : memref<32x768xf32, #tpu.memory_space<vmem>>, vector<32x16xf32>
    %c0_22 = arith.constant 0 : index
    %c512 = arith.constant 512 : index
    %50 = vector.load %arg3[%c0_22, %c512] : memref<32x768xf32, #tpu.memory_space<vmem>>, vector<16x6xf32>
    %cst_23 = arith.constant dense<0.000000e+00> : vector<8x16xf32>
    %51 = tpu.matmul %48, %49, %cst_23 {dimension_numbers = #tpu.dot_dimension_numbers<[1], [0], [0], [1], [0, 0, 1, 1], [], []>} : vector<8x32xf32>, vector<32x16xf32>, vector<8x16xf32> -> vector<8x16xf32>
    %c0_24 = arith.constant 0 : index
    %c384_25 = arith.constant 384 : index
    %52 = vector.load %arg4[%c0_24, %c384_25] : memref<1x768xf32, #tpu.memory_space<vmem>>, vector<1x16xf32>
    %53 = vector.broadcast %52 : vector<1x16xf32> to vector<8x16xf32>
    %54 = arith.addf %51, %53 : vector<8x16xf32>
    %cst_26 = arith.constant 0.000000e+00 : f32
    %55 = vector.broadcast %cst_26 : f32 to vector<8x16xf32>
    %56 = arith.maximumf %54, %55 : vector<8x16xf32>
    %cst_27 = arith.constant dense<0.000000e+00> : vector<8x6xf32>
    %57 = tpu.matmul %56, %50, %cst_27 {dimension_numbers = #tpu.dot_dimension_numbers<[1], [0], [0], [1], [0, 0, 1, 1], [], []>} : vector<8x16xf32>, vector<16x6xf32>, vector<8x6xf32> -> vector<8x6xf32>
    %c0_28 = arith.constant 0 : index
    %c512_29 = arith.constant 512 : index
    %58 = vector.load %arg4[%c0_28, %c512_29] : memref<1x768xf32, #tpu.memory_space<vmem>>, vector<1x6xf32>
    %59 = vector.broadcast %58 : vector<1x6xf32> to vector<8x6xf32>
    %60 = arith.addf %57, %59 : vector<8x6xf32>
    %c0_30 = arith.constant 0 : index
    %c640 = arith.constant 640 : index
    %61 = vector.load %arg3[%c0_30, %c640] : memref<32x768xf32, #tpu.memory_space<vmem>>, vector<32x6xf32>
    %cst_31 = arith.constant dense<0.000000e+00> : vector<8x6xf32>
    %62 = tpu.matmul %48, %61, %cst_31 {dimension_numbers = #tpu.dot_dimension_numbers<[1], [0], [0], [1], [0, 0, 1, 1], [], []>} : vector<8x32xf32>, vector<32x6xf32>, vector<8x6xf32> -> vector<8x6xf32>
    %c0_32 = arith.constant 0 : index
    %c640_33 = arith.constant 640 : index
    %63 = vector.load %arg4[%c0_32, %c640_33] : memref<1x768xf32, #tpu.memory_space<vmem>>, vector<1x6xf32>
    %64 = vector.broadcast %63 : vector<1x6xf32> to vector<8x6xf32>
    %65 = arith.addf %62, %64 : vector<8x6xf32>
    %cst_34 = arith.constant 0.000000e+00 : f32
    %66 = vector.broadcast %cst_34 : f32 to vector<8x6xf32>
    %67 = arith.maximumf %65, %66 : vector<8x6xf32>
    %68 = math.absf %65 : vector<8x6xf32>
    %cst_35 = arith.constant 0.000000e+00 : f32
    %69 = vector.broadcast %cst_35 : f32 to vector<8x6xf32>
    %70 = arith.subf %69, %68 : vector<8x6xf32>
    %71 = math.exp %70 : vector<8x6xf32>
    %72 = math.log1p %71 : vector<8x6xf32>
    %73 = arith.addf %67, %72 : vector<8x6xf32>
    %cst_36 = arith.constant 5.000000e-02 : f32
    %74 = vector.broadcast %cst_36 : f32 to vector<8x6xf32>
    %75 = arith.addf %73, %74 : vector<8x6xf32>
    %76 = tpu.concatenate %60, %75 in 1 : vector<8x6xf32>, vector<8x6xf32> -> vector<8x12xf32>
    %c0_37 = arith.constant 0 : index
    %c0_38 = arith.constant 0 : index
    %c0_39 = arith.constant 0 : index
    %77 = vector.load %arg5[%c0_37, %c0_38, %c0_39] : memref<1x8x12xf32, #tpu.memory_space<vmem>>, vector<1x8x12xf32>
    %78 = vector.shape_cast %77 : vector<1x8x12xf32> to vector<8x12xf32>
    %79 = vector.shape_cast %76 : vector<8x12xf32> to vector<1x8x12xf32>
    tpu.vector_store %arg5[%c0_37, %c0_38, %c0_39], %79 {strides = array<i32>} : memref<1x8x12xf32, #tpu.memory_space<vmem>>, vector<1x8x12xf32>,
    %c0_40 = arith.constant 0 : index
    %c0_41 = arith.constant 0 : index
    %80 = vector.load %arg7[%c0_40, %c0_41] : memref<8x32xf32, #tpu.memory_space<vmem>>, vector<8x32xf32>
    tpu.vector_store %arg7[%c0_40, %c0_41], %48 {strides = array<i32>} : memref<8x32xf32, #tpu.memory_space<vmem>>, vector<8x32xf32>,
    %c0_42 = arith.constant 0 : index
    %c0_43 = arith.constant 0 : index
    %81 = vector.load %arg6[%c0_42, %c0_43] : memref<8x32xf32, #tpu.memory_space<vmem>>, vector<8x32xf32>
    tpu.vector_store %arg6[%c0_42, %c0_43], %48 {strides = array<i32>} : memref<8x32xf32, #tpu.memory_space<vmem>>, vector<8x32xf32>,
    return
  }
  func.func @transform_0(%arg0: i32) -> (i32, i32, i32) {
    %c0_i32 = arith.constant 0 : i32
    %c0_i32_0 = arith.constant 0 : i32
    %c0_i32_1 = arith.constant 0 : i32
    return %arg0, %c0_i32, %c0_i32_0 : i32, i32, i32
  }
  func.func @transform_1(%arg0: i32) -> (i32, i32) {
    %c0_i32 = arith.constant 0 : i32
    %c0_i32_0 = arith.constant 0 : i32
    %c0_i32_1 = arith.constant 0 : i32
    return %c0_i32, %c0_i32_0 : i32, i32
  }
  func.func @transform_2(%arg0: i32) -> (i32, i32) {
    %c0_i32 = arith.constant 0 : i32
    %c0_i32_0 = arith.constant 0 : i32
    %c0_i32_1 = arith.constant 0 : i32
    return %c0_i32, %c0_i32_0 : i32, i32
  }
  func.func @transform_3(%arg0: i32) -> (i32, i32) {
    %c0_i32 = arith.constant 0 : i32
    %c0_i32_0 = arith.constant 0 : i32
    %c0_i32_1 = arith.constant 0 : i32
    return %c0_i32, %c0_i32_0 : i32, i32
  }
  func.func @transform_4(%arg0: i32) -> (i32, i32, i32) {
    %c0_i32 = arith.constant 0 : i32
    %c0_i32_0 = arith.constant 0 : i32
    %c0_i32_1 = arith.constant 0 : i32
    return %arg0, %c0_i32, %c0_i32_0 : i32, i32, i32
  }
  func.func @transform_5(%arg0: i32) -> (i32, i32) {
    %c0_i32 = arith.constant 0 : i32
    %c0_i32_0 = arith.constant 0 : i32
    %c0_i32_1 = arith.constant 0 : i32
    return %c0_i32, %c0_i32_0 : i32, i32
  }
}

</mosaic_0001>

<llo_original>
// kernel: tpu_custom_call.1
$region0: #{tpu_custom_call.1}
  #allocation0 [shape = 'u32[]', space=smem, size = 0x4, offset = 0x4, fixed_abs, tag = 'smem constant byte address 0x4 - core index']
  #allocation1 [shape = 'u32[144,128]{1,0:T(1,128)}', space=vmem, size = 0x12000, scoped, tag = 'internal scratch']
  #allocation2 [shape = 'f32[8,32]{1,0:T(8,128)}', space=vmem, size = 0x1000, scoped, tag = 'scratch operand']
  %s0 = inlined_call_operand.hbm [shape: f32[8,8,32], index: 0, kind: input, shape index: {}]
  %s1 = inlined_call_operand.hbm [shape: f32[8,32], index: 1, kind: input, shape index: {}]
  %s2 = inlined_call_operand.hbm [shape: f32[32,768], index: 2, kind: input, shape index: {}]
  %s3 = inlined_call_operand.vmem [shape: f32[1,768], index: 3, kind: input, shape index: {}]
  %s4 = inlined_call_operand.hbm [shape: f32[8,8,12], index: 4, kind: output, shape index: {0}]
  %s5 = inlined_call_operand.hbm [shape: f32[8,32], index: 5, kind: output, shape index: {1}]
  %6 = xla_tuple %s4, %s5
  %s7 = sld [smem:[#allocation0]]
  $region73: #{tpu_custom_call.1} parent=0
    _
  %s9 = ssub.s32 1, %s7
  %s10 = scalar_select 0, %s9, %s7
  $region1: #{tpu_custom_call.1} parent=0
    #allocation3 [shape = 'u8[8192]{0}', space=vmem, size = 0x2000, scoped, tag = 'input window, operand 0']
    #allocation4 [shape = 's32[2]{0}', space=sflag, size = 0x8, scoped, tag = 'scoped memory for tpu_custom_call.1']
    #allocation5 [shape = 's32[2]{0}', space=sflag, size = 0x8, scoped, tag = 'scoped memory for tpu_custom_call.1']
    #allocation6 [shape = 'u8[4096]{0}', space=vmem, size = 0x1000, scoped, tag = 'input window, operand 1, single buffered']
    #allocation7 [shape = 's32[1]{0}', space=sflag, size = 0x4, scoped, tag = 'scoped memory for tpu_custom_call.1']
    #allocation8 [shape = 'u8[98304]{0}', space=vmem, size = 0x18000, scoped, tag = 'input window, operand 2, single buffered']
    #allocation9 [shape = 'u8[8192]{0}', space=vmem, size = 0x2000, scoped, tag = 'output window, operand 0']
    #allocation10 [shape = 'u8[4096]{0}', space=vmem, size = 0x1000, scoped, tag = 'output window, operand 1, single buffered']
    #allocation11 [shape = 's32[1]{0}', space=sflag, size = 0x4, scoped, tag = 'scoped memory for tpu_custom_call.1']
    %11 = vsyncpa [#allocation4], 0
    %s12 = scalar_lea.sflag [#allocation4], 1
    %13 = vsyncpa %s12, 0
    %14 = vsyncpa [#allocation7], 0
    %15 = vsyncpa [#allocation5], 0
    %s16 = scalar_lea.sflag [#allocation5], 1
    %17 = vsyncpa %s16, 0
    %18 = vsyncpa [#allocation11], 0
    loop: start=0, step=1, limit=10
    $region2: #{tpu_custom_call.1} parent=1 // loop_pre_header
      _
    $region3: #{tpu_custom_call.1} parent=1 // loop_header
      %s20 = sphi 0, %s24
      %p21 = scmp.ge.s32.totalorder %s20, 10
      %s30 = sphi 0, %s32
      %s33 = sphi 0, %s30
      %s34 = sphi 0, %s33
      %s50 = sphi 0, %s34
      %s54 = sphi 0, %s54
      %s56 = sphi 0, %s54
      %s57 = sphi 0, %s56
      %s71 = sphi 0, %s57
      %s75 = sphi 0, %s75
      %s77 = sphi 0, %s75
      %s78 = sphi 0, %s77
      %s92 = sphi 0, %s78
      %s96 = sphi 0, %s96
      %s98 = sphi 0, %s96
      %s99 = sphi 0, %s98
      %s113 = sphi 0, %s99
      %s119 = sphi 0, %s121
      %s122 = sphi 0, %s119
      %s123 = sphi 0, %s122
      %s139 = sphi 0, %s123
      %s143 = sphi 0, %s143
      %s145 = sphi 0, %s143
      %s146 = sphi 0, %s145
      %s160 = sphi 0, %s146
    $region4: #{tpu_custom_call.1} parent=1 // loop_header_branch
      %23 = sbr.rel (%p21) target = $region8
    $region5: #{tpu_custom_call.1} parent=1 // loop_body
      %s25 = ssub.s32 %s20, 1
      %s26 = ssub.s32 %s20, 2
      %s27 = sadd.s32 %s20, 1
      %s28 = ssub.s32 %s20, %s27
      %p29 = scmp.eq.s32.totalorder %s28, 0
      %s31 = sadd.s32 %s30, 1
      %s32 = scalar_select %p29, %s30, %s31
      %p35 = pneg %p29
      %p36 = scmp.eq.s32.totalorder %s20, 7
      %p37 = por %p35, %p36
      %p38 = scmp.ne.s32.totalorder %s30, %s33
      %p39 = scmp.eq.s32.totalorder %s20, 0
      %p40 = por %p38, %p39
      %p41 = scmp.ne.s32.totalorder %s30, %s33
      %p42 = scmp.eq.s32.totalorder %s25, 7
      %p43 = por %p41, %p42
      %p44 = scmp.ne.s32.totalorder %s33, %s34
      %p45 = scmp.eq.s32.totalorder %s25, 0
      %p46 = por %p44, %p45
      %p47 = scmp.ne.s32.totalorder %s33, %s34
      %p48 = scmp.eq.s32.totalorder %s26, 7
      %p49 = por %p47, %p48
      %p51 = scmp.ne.s32.totalorder %s34, %s50
      %p52 = scmp.eq.s32.totalorder %s26, 0
      %p53 = por %p51, %p52
      %s55 = sadd.s32 %s54, 1
      %p58 = scmp.eq.s32.totalorder %s20, 7
      %p59 = scmp.ne.s32.totalorder %s54, %s56
      %p60 = scmp.eq.s32.totalorder %s20, 0
      %p61 = por %p59, %p60
      %p62 = scmp.ne.s32.totalorder %s54, %s56
      %p63 = scmp.eq.s32.totalorder %s25, 7
      %p64 = por %p62, %p63
      %p65 = scmp.ne.s32.totalorder %s56, %s57
      %p66 = scmp.eq.s32.totalorder %s25, 0
      %p67 = por %p65, %p66
      %p68 = scmp.ne.s32.totalorder %s56, %s57
      %p69 = scmp.eq.s32.totalorder %s26, 7
      %p70 = por %p68, %p69
      %p72 = scmp.ne.s32.totalorder %s57, %s71
      %p73 = scmp.eq.s32.totalorder %s26, 0
      %p74 = por %p72, %p73
      %s76 = sadd.s32 %s75, 1
      %p79 = scmp.eq.s32.totalorder %s20, 7
      %p80 = scmp.ne.s32.totalorder %s75, %s77
      %p81 = scmp.eq.s32.totalorder %s20, 0
      %p82 = por %p80, %p81
      %p83 = scmp.ne.s32.totalorder %s75, %s77
      %p84 = scmp.eq.s32.totalorder %s25, 7
      %p85 = por %p83, %p84
      %p86 = scmp.ne.s32.totalorder %s77, %s78
      %p87 = scmp.eq.s32.totalorder %s25, 0
      %p88 = por %p86, %p87
      %p89 = scmp.ne.s32.totalorder %s77, %s78
      %p90 = scmp.eq.s32.totalorder %s26, 7
      %p91 = por %p89, %p90
      %p93 = scmp.ne.s32.totalorder %s78, %s92
      %p94 = scmp.eq.s32.totalorder %s26, 0
      %p95 = por %p93, %p94
      %s97 = sadd.s32 %s96, 1
      %p100 = scmp.eq.s32.totalorder %s20, 7
      %p101 = scmp.ne.s32.totalorder %s96, %s98
      %p102 = scmp.eq.s32.totalorder %s20, 0
      %p103 = por %p101, %p102
      %p104 = scmp.ne.s32.totalorder %s96, %s98
      %p105 = scmp.eq.s32.totalorder %s25, 7
      %p106 = por %p104, %p105
      %p107 = scmp.ne.s32.totalorder %s98, %s99
      %p108 = scmp.eq.s32.totalorder %s25, 0
      %p109 = por %p107, %p108
      %p110 = scmp.ne.s32.totalorder %s98, %s99
      %p111 = scmp.eq.s32.totalorder %s26, 7
      %p112 = por %p110, %p111
      %p114 = scmp.ne.s32.totalorder %s99, %s113
      %p115 = scmp.eq.s32.totalorder %s26, 0
      %p116 = por %p114, %p115
      %s117 = ssub.s32 %s20, %s27
      %p118 = scmp.eq.s32.totalorder %s117, 0
      %s120 = sadd.s32 %s119, 1
      %s121 = scalar_select %p118, %s119, %s120
      %p124 = pneg %p118
      %p125 = scmp.eq.s32.totalorder %s20, 7
      %p126 = por %p124, %p125
      %p127 = scmp.ne.s32.totalorder %s119, %s122
      %p128 = scmp.eq.s32.totalorder %s20, 0
      %p129 = por %p127, %p128
      %p130 = scmp.ne.s32.totalorder %s119, %s122
      %p131 = scmp.eq.s32.totalorder %s25, 7
      %p132 = por %p130, %p131
      %p133 = scmp.ne.s32.totalorder %s122, %s123
      %p134 = scmp.eq.s32.totalorder %s25, 0
      %p135 = por %p133, %p134
      %p136 = scmp.ne.s32.totalorder %s122, %s123
      %p137 = scmp.eq.s32.totalorder %s26, 7
      %p138 = por %p136, %p137
      %p140 = scmp.ne.s32.totalorder %s123, %s139
      %p141 = scmp.eq.s32.totalorder %s26, 0
      %p142 = por %p140, %p141
      %s144 = sadd.s32 %s143, 1
      %p147 = scmp.eq.s32.totalorder %s20, 7
      %p148 = scmp.ne.s32.totalorder %s143, %s145
      %p149 = scmp.eq.s32.totalorder %s20, 0
      %p150 = por %p148, %p149
      %p151 = scmp.ne.s32.totalorder %s143, %s145
      %p152 = scmp.eq.s32.totalorder %s25, 7
      %p153 = por %p151, %p152
      %p154 = scmp.ne.s32.totalorder %s145, %s146
      %p155 = scmp.eq.s32.totalorder %s25, 0
      %p156 = por %p154, %p155
      %p157 = scmp.ne.s32.totalorder %s145, %s146
      %p158 = scmp.eq.s32.totalorder %s26, 7
      %p159 = por %p157, %p158
      %p161 = scmp.ne.s32.totalorder %s146, %s160
      %p162 = scmp.eq.s32.totalorder %s26, 0
      %p163 = por %p161, %p162
      %p164 = scmp.le.s32.totalorder 1, %s20
      %p165 = scmp.lt.s32.totalorder %s20, 9
      %p166 = pnand %p164, %p165
      %p167 = pneg %p166
      // Predicated region
      $region9: #{tpu_custom_call.1} parent=5 // pred_check
        _
      $region10: #{tpu_custom_call.1} parent=5 // pred_check_branch
        %169 = sbr.rel (%p166) target = $region12
      $region11: #{tpu_custom_call.1} parent=5 // pred_region
        %s170 = ssub.s32 %s20, 1
        // Predicated region
        $region13: #{tpu_custom_call.1} parent=11 // pred_check
          %p171 = pneg %p67
        $region14: #{tpu_custom_call.1} parent=11 // pred_check_branch
          %173 = sbr.rel (%p171) target = $region16
        $region15: #{tpu_custom_call.1} parent=11 // pred_region
          %s175 = ssub.s32 128, 128
          %176 = vsyncadd [#allocation7], %s175
          %s178 = sshll.u32 [#allocation6], 4
          %s179 = int_to_ptr.vmem [resolvable:$true] %s178
          %181 = dma.hbm_to_vmem [thread:$0]  %s1, 128, %s179, [#allocation7]
        $region16: #{tpu_custom_call.1} parent=11 // pred_fallthru
          _
        // Predicated region
        $region17: #{tpu_custom_call.1} parent=11 // pred_check
          %p182 = pneg %p88
        $region18: #{tpu_custom_call.1} parent=11 // pred_check_branch
          %184 = sbr.rel (%p182) target = $region20
        $region19: #{tpu_custom_call.1} parent=11 // pred_region
          %s186 = ssub.s32 3072, 3072
          %187 = vsyncadd [#allocation7], %s186
          %s188 = sshll.u32 [#allocation8], 4
          %s189 = int_to_ptr.vmem [resolvable:$true] %s188
          %194 = dma.hbm_to_vmem [thread:$0]  %s2, 3072, %s189, [#allocation7], 768, 768, 48
        $region20: #{tpu_custom_call.1} parent=11 // pred_fallthru
          _
        // Predicated region
        $region21: #{tpu_custom_call.1} parent=11 // pred_check
          %p195 = pneg %p109
        $region22: #{tpu_custom_call.1} parent=11 // pred_check_branch
          %197 = sbr.rel (%p195) target = $region24
        $region23: #{tpu_custom_call.1} parent=11 // pred_region
          _
        $region24: #{tpu_custom_call.1} parent=11 // pred_fallthru
          _
      $region12: #{tpu_custom_call.1} parent=5 // pred_fallthru
        _
      %p198 = scmp.lt.s32.totalorder %s20, 8
      // Predicated region
      $region25: #{tpu_custom_call.1} parent=5 // pred_check
        %p199 = pneg %p198
      $region26: #{tpu_custom_call.1} parent=5 // pred_check_branch
        %201 = sbr.rel (%p199) target = $region28
      $region27: #{tpu_custom_call.1} parent=5 // pred_region
        // Predicated region
        $region29: #{tpu_custom_call.1} parent=27 // pred_check
          %p202 = pneg %p40
        $region30: #{tpu_custom_call.1} parent=27 // pred_check_branch
          %204 = sbr.rel (%p202) target = $region32
        $region31: #{tpu_custom_call.1} parent=27 // pred_region
          %s205 = sand.u32 %s30, 1
          %s206 = scalar_lea.sflag [#allocation4], %s205
          %s207 = sand.u32 %s30, 1
          %s208 = smul.addr %s207, 8
          %s209 = scalar_lea.vmem [#allocation3], %s208
          %s211 = ssub.s32 128, 128
          %212 = vsyncadd %s206, %s211
          %s213 = smul.addr %s20, 128
          %s214 = scalar_lea.hbm %s0, %s213
          %s216 = sshll.u32 %s209, 4
          %s217 = int_to_ptr.vmem [resolvable:$true] %s216
          %219 = dma.hbm_to_vmem [thread:$0]  %s214, 128, %s217, %s206
        $region32: #{tpu_custom_call.1} parent=27 // pred_fallthru
          _
      $region28: #{tpu_custom_call.1} parent=5 // pred_fallthru
        _
      %p220 = scmp.le.s32.totalorder 1, %s20
      %p221 = scmp.lt.s32.totalorder %s20, 9
      %p222 = pnand %p220, %p221
      %p223 = pneg %p222
      // Predicated region
      $region33: #{tpu_custom_call.1} parent=5 // pred_check
        _
      $region34: #{tpu_custom_call.1} parent=5 // pred_check_branch
        %225 = sbr.rel (%p222) target = $region36
      $region35: #{tpu_custom_call.1} parent=5 // pred_region
        %s226 = ssub.s32 %s20, 1
        %s227 = sand.u32 %s33, 1
        %s228 = scalar_lea.sflag [#allocation4], %s227
        %s229 = sand.u32 %s33, 1
        %s230 = smul.addr %s229, 8
        %s231 = scalar_lea.vmem [#allocation3], %s230
        // Predicated region
        $region37: #{tpu_custom_call.1} parent=35 // pred_check
          %p232 = pneg %p46
        $region38: #{tpu_custom_call.1} parent=35 // pred_check_branch
          %234 = sbr.rel (%p232) target = $region40
        $region39: #{tpu_custom_call.1} parent=35 // pred_region
          %235 = dma.done %s228, 128
        $region40: #{tpu_custom_call.1} parent=35 // pred_fallthru
          _
        // Predicated region
        $region41: #{tpu_custom_call.1} parent=35 // pred_check
          %p236 = pneg %p67
        $region42: #{tpu_custom_call.1} parent=35 // pred_check_branch
          %238 = sbr.rel (%p236) target = $region44
        $region43: #{tpu_custom_call.1} parent=35 // pred_region
          %239 = dma.done [#allocation7], 128
        $region44: #{tpu_custom_call.1} parent=35 // pred_fallthru
          _
        // Predicated region
        $region45: #{tpu_custom_call.1} parent=35 // pred_check
          %p240 = pneg %p88
        $region46: #{tpu_custom_call.1} parent=35 // pred_check_branch
          %242 = sbr.rel (%p240) target = $region48
        $region47: #{tpu_custom_call.1} parent=35 // pred_region
          %243 = dma.done [#allocation7], 3072
        $region48: #{tpu_custom_call.1} parent=35 // pred_fallthru
          _
        %s244 = sand.u32 %s33, 1
        %s245 = scalar_lea.sflag [#allocation4], %s244
        %s246 = sand.u32 %s33, 1
        %s247 = smul.addr %s246, 8
        %s248 = scalar_lea.vmem [#allocation3], %s247
        %p249 = pneg %p46
        %p250 = pneg %p43
        %p251 = pneg %p67
        %p252 = pneg %p64
        %p253 = pneg %p88
        %p254 = pneg %p85
        %p255 = pneg %p109
        %p256 = pneg %p106
        %p257 = pneg %p135
        %p258 = pneg %p132
        %s259 = sand.u32 %s122, 1
        %s260 = scalar_lea.sflag [#allocation5], %s259
        %s261 = sand.u32 %s122, 1
        %s262 = smul.addr %s261, 8
        %s263 = scalar_lea.vmem [#allocation9], %s262
        %p264 = pneg %p156
        %p265 = pneg %p153
        %p266 = scmp.eq.s32.totalorder %s25, 0
        // Predicated region
        $region49: #{tpu_custom_call.1} parent=35 // pred_check
          %p267 = pneg %p266
        $region50: #{tpu_custom_call.1} parent=35 // pred_check_branch
          %269 = sbr.rel (%p267) target = $region52
        $region51: #{tpu_custom_call.1} parent=35 // pred_region
          %v270 = vld [vmem:[#allocation6] sm:$0xff]
          %vm271 = vcmask 261120
          %272 = vst.msk [vmem:[#allocation2] sm:$0xff] %vm271, %v270
        $region52: #{tpu_custom_call.1} parent=35 // pred_fallthru
          _
        %v273 = vld [vmem:[%s231] sm:$0xff]
        %v274 = vld [vmem:[#allocation2] sm:$0xff]
        %v275 = vld [vmem:[#allocation8] sm:$0xff]
        %v276 = vld [vmem:[#allocation8 + $0x30] sm:$0xff]
        %v277 = vld [vmem:[#allocation8 + $0x60] sm:$0xff]
        %v278 = vld [vmem:[#allocation8 + $0x90] sm:$0xff]
        %v279 = vld [vmem:[%s3] sm:$0x1]
        %v281 = vlaneseq
        %v282 = vshrl.u32 %v281, 7
        %v283 = vsub.s32 0, %v282
        %v284 = vrot.slane %v279, %v283
        %vm286 = vcmask 261120
        %v288 = vsel %vm286, %v273, 0
        %290 = vmatprep.subr.mxu0 0.0
        %291 = vmatpush1.msra.mxu0 %v275
        %292 = vmatprep.subr.mxu0 0.0
        %293 = vmatpush1.msra.mxu0 %v276
        %294 = vmatprep.subr.mxu0 0.0
        %295 = vmatpush1.msra.mxu0 %v277
        %296 = vmatprep.subr.mxu0 0.0
        %297 = vmatpush1.msra.mxu0 %v278
        %298 = vmatprep.subr.mxu0 0.0
        %299 = vmatpush1.msra.mxu0 0.0
        %300 = vmatprep.subr.mxu0 0.0
        %301 = vmatpush1.msra.mxu0 0.0
        %302 = vmatprep.subr.mxu0 0.0
        %303 = vmatpush1.msra.mxu0 0.0
        %304 = vmatprep.subr.mxu0 0.0
        %305 = vmatpush1.msra.mxu0 0.0
        %306 = vmatprep.subr.mxu0 0.0
        %307 = vmatpush1.msra.mxu0 0.0
        %308 = vmatprep.subr.mxu0 0.0
        %309 = vmatpush1.msra.mxu0 0.0
        %310 = vmatprep.subr.mxu0 0.0
        %311 = vmatpush1.msra.mxu0 0.0
        %312 = vmatprep.subr.mxu0 0.0
        %313 = vmatpush1.msra.mxu0 0.0
        %314 = vmatprep.subr.mxu0 0.0
        %315 = vmatpush1.msra.mxu0 0.0
        %316 = vmatprep.subr.mxu0 0.0
        %317 = vmatpush1.msra.mxu0 0.0
        %318 = vmatprep.subr.mxu0 0.0
        %319 = vmatpush1.msra.mxu0 0.0
        %320 = vmatprep.subr.mxu0 0.0
        %321 = vmatpush1.msra.mxu0 0.0
        %322 = vmatprep.subr.mxu0 0.0
        %323 = vmatpush1.msra.mxu0 0.0
        %324 = vmatprep.subr.mxu0 0.0
        %325 = vmatpush1.msra.mxu0 0.0
        %326 = vmatprep.subr.mxu0 0.0
        %327 = vmatpush1.msra.mxu0 0.0
        %328 = vmatprep.subr.mxu0 0.0
        %329 = vmatpush1.msra.mxu0 0.0
        %330 = vmatprep.subr.mxu0 0.0
        %331 = vmatpush1.msra.mxu0 0.0
        %332 = vmatprep.subr.mxu0 0.0
        %333 = vmatpush1.msra.mxu0 0.0
        %334 = vmatprep.subr.mxu0 0.0
        %335 = vmatpush1.msra.mxu0 0.0
        %336 = vmatprep.subr.mxu0 0.0
        %337 = vmatpush1.msra.mxu0 0.0
        %338 = vmatprep.subr.mxu0 0.0
        %339 = vmatpush1.msra.mxu0 0.0
        %340 = vmatprep.subr.mxu0 0.0
        %341 = vmatpush1.msra.mxu0 0.0
        %342 = vmatprep.subr.mxu0 0.0
        %343 = vmatpush1.msra.mxu0 0.0
        %344 = vmatprep.subr.mxu0 0.0
        %345 = vmatpush1.msra.mxu0 0.0
        %346 = vmatprep.subr.mxu0 0.0
        %347 = vmatpush1.msra.mxu0 0.0
        %348 = vmatprep.subr.mxu0 0.0
        %349 = vmatpush1.msra.mxu0 0.0
        %350 = vmatprep.subr.mxu0 0.0
        %351 = vmatpush1.msra.mxu0 0.0
        %352 = vmatprep.subr.mxu0 0.0
        %353 = vmatpush1.msra.mxu0 0.0
        %354 = vmatprep.mubr.f32.mxu0 0.0
        %355 = vmatmul.mubr.f32.gmra.mrb[0].mxu0 %v288
        %v356 = vpop.f32.mrb[0].mxu0
        %v357 = vadd.f32 %v284, %v356
        %v358 = vpop.f32.mrb[0].mxu0
        %359 = vdwg.mxu0
        %v360 = vmax.f32 %v357, 0.0
        %v361 = vld [vmem:[#allocation8 + $0x8] sm:$0xff]
        %v362 = vld [vmem:[#allocation8 + $0x38] sm:$0xff]
        %v363 = vld [vmem:[#allocation8 + $0x68] sm:$0xff]
        %v364 = vld [vmem:[#allocation8 + $0x98] sm:$0xff]
        %v365 = vld [vmem:[#allocation8 + $0x10] sm:$0xff]
        %v366 = vld [vmem:[#allocation8 + $0x40] sm:$0xff]
        %v367 = vld [vmem:[#allocation8 + $0x70] sm:$0xff]
        %v368 = vld [vmem:[#allocation8 + $0xa0] sm:$0xff]
        %v369 = vld [vmem:[%s3 + $0x1] sm:$0x1]
        %v371 = vlaneseq
        %v372 = vshrl.u32 %v371, 7
        %v373 = vsub.s32 0, %v372
        %v374 = vrot.slane %v369, %v373
        %v377 = vsel %vm286, %v360, 0
        %379 = vmatprep.subr.mxu0 0.0
        %380 = vmatpush1.msra.mxu0 %v361
        %381 = vmatprep.subr.mxu0 0.0
        %382 = vmatpush1.msra.mxu0 %v362
        %383 = vmatprep.subr.mxu0 0.0
        %384 = vmatpush1.msra.mxu0 %v363
        %385 = vmatprep.subr.mxu0 0.0
        %386 = vmatpush1.msra.mxu0 %v364
        %387 = vmatprep.subr.mxu0 0.0
        %388 = vmatpush1.msra.mxu0 0.0
        %389 = vmatprep.subr.mxu0 0.0
        %390 = vmatpush1.msra.mxu0 0.0
        %391 = vmatprep.subr.mxu0 0.0
        %392 = vmatpush1.msra.mxu0 0.0
        %393 = vmatprep.subr.mxu0 0.0
        %394 = vmatpush1.msra.mxu0 0.0
        %395 = vmatprep.subr.mxu0 0.0
        %396 = vmatpush1.msra.mxu0 0.0
        %397 = vmatprep.subr.mxu0 0.0
        %398 = vmatpush1.msra.mxu0 0.0
        %399 = vmatprep.subr.mxu0 0.0
        %400 = vmatpush1.msra.mxu0 0.0
        %401 = vmatprep.subr.mxu0 0.0
        %402 = vmatpush1.msra.mxu0 0.0
        %403 = vmatprep.subr.mxu0 0.0
        %404 = vmatpush1.msra.mxu0 0.0
        %405 = vmatprep.subr.mxu0 0.0
        %406 = vmatpush1.msra.mxu0 0.0
        %407 = vmatprep.subr.mxu0 0.0
        %408 = vmatpush1.msra.mxu0 0.0
        %409 = vmatprep.subr.mxu0 0.0
        %410 = vmatpush1.msra.mxu0 0.0
        %411 = vmatprep.subr.mxu0 0.0
        %412 = vmatpush1.msra.mxu0 0.0
        %413 = vmatprep.subr.mxu0 0.0
        %414 = vmatpush1.msra.mxu0 0.0
        %415 = vmatprep.subr.mxu0 0.0
        %416 = vmatpush1.msra.mxu0 0.0
        %417 = vmatprep.subr.mxu0 0.0
        %418 = vmatpush1.msra.mxu0 0.0
        %419 = vmatprep.subr.mxu0 0.0
        %420 = vmatpush1.msra.mxu0 0.0
        %421 = vmatprep.subr.mxu0 0.0
        %422 = vmatpush1.msra.mxu0 0.0
        %423 = vmatprep.subr.mxu0 0.0
        %424 = vmatpush1.msra.mxu0 0.0
        %425 = vmatprep.subr.mxu0 0.0
        %426 = vmatpush1.msra.mxu0 0.0
        %427 = vmatprep.subr.mxu0 0.0
        %428 = vmatpush1.msra.mxu0 0.0
        %429 = vmatprep.subr.mxu0 0.0
        %430 = vmatpush1.msra.mxu0 0.0
        %431 = vmatprep.subr.mxu0 0.0
        %432 = vmatpush1.msra.mxu0 0.0
        %433 = vmatprep.subr.mxu0 0.0
        %434 = vmatpush1.msra.mxu0 0.0
        %435 = vmatprep.subr.mxu0 0.0
        %436 = vmatpush1.msra.mxu0 0.0
        %437 = vmatprep.subr.mxu0 0.0
        %438 = vmatpush1.msra.mxu0 0.0
        %439 = vmatprep.subr.mxu0 0.0
        %440 = vmatpush1.msra.mxu0 0.0
        %441 = vmatprep.subr.mxu0 0.0
        %442 = vmatpush1.msra.mxu0 0.0
        %443 = vmatprep.mubr.f32.mxu0 0.0
        %444 = vmatmul.mubr.f32.gmra.mrb[0].mxu0 %v377
        %v445 = vpop.f32.mrb[0].mxu0
        %v446 = vadd.f32 %v374, %v445
        %v447 = vpop.f32.mrb[0].mxu0
        %448 = vdwg.mxu0
        %v449 = vld [vmem:[%s3 + $0x2] sm:$0x1]
        %v451 = vlaneseq
        %v452 = vshrl.u32 %v451, 7
        %v453 = vsub.s32 0, %v452
        %v454 = vrot.slane %v449, %v453
        %v457 = vsel %vm286, %v274, 0
        %459 = vmatprep.subr.mxu0 0.0
        %460 = vmatpush1.msra.mxu0 %v365
        %461 = vmatprep.subr.mxu0 0.0
        %462 = vmatpush1.msra.mxu0 %v366
        %463 = vmatprep.subr.mxu0 0.0
        %464 = vmatpush1.msra.mxu0 %v367
        %465 = vmatprep.subr.mxu0 0.0
        %466 = vmatpush1.msra.mxu0 %v368
        %467 = vmatprep.subr.mxu0 0.0
        %468 = vmatpush1.msra.mxu0 0.0
        %469 = vmatprep.subr.mxu0 0.0
        %470 = vmatpush1.msra.mxu0 0.0
        %471 = vmatprep.subr.mxu0 0.0
        %472 = vmatpush1.msra.mxu0 0.0
        %473 = vmatprep.subr.mxu0 0.0
        %474 = vmatpush1.msra.mxu0 0.0
        %475 = vmatprep.subr.mxu0 0.0
        %476 = vmatpush1.msra.mxu0 0.0
        %477 = vmatprep.subr.mxu0 0.0
        %478 = vmatpush1.msra.mxu0 0.0
        %479 = vmatprep.subr.mxu0 0.0
        %480 = vmatpush1.msra.mxu0 0.0
        %481 = vmatprep.subr.mxu0 0.0
        %482 = vmatpush1.msra.mxu0 0.0
        %483 = vmatprep.subr.mxu0 0.0
        %484 = vmatpush1.msra.mxu0 0.0
        %485 = vmatprep.subr.mxu0 0.0
        %486 = vmatpush1.msra.mxu0 0.0
        %487 = vmatprep.subr.mxu0 0.0
        %488 = vmatpush1.msra.mxu0 0.0
        %489 = vmatprep.subr.mxu0 0.0
        %490 = vmatpush1.msra.mxu0 0.0
        %491 = vmatprep.subr.mxu0 0.0
        %492 = vmatpush1.msra.mxu0 0.0
        %493 = vmatprep.subr.mxu0 0.0
        %494 = vmatpush1.msra.mxu0 0.0
        %495 = vmatprep.subr.mxu0 0.0
        %496 = vmatpush1.msra.mxu0 0.0
        %497 = vmatprep.subr.mxu0 0.0
        %498 = vmatpush1.msra.mxu0 0.0
        %499 = vmatprep.subr.mxu0 0.0
        %500 = vmatpush1.msra.mxu0 0.0
        %501 = vmatprep.subr.mxu0 0.0
        %502 = vmatpush1.msra.mxu0 0.0
        %503 = vmatprep.subr.mxu0 0.0
        %504 = vmatpush1.msra.mxu0 0.0
        %505 = vmatprep.subr.mxu0 0.0
        %506 = vmatpush1.msra.mxu0 0.0
        %507 = vmatprep.subr.mxu0 0.0
        %508 = vmatpush1.msra.mxu0 0.0
        %509 = vmatprep.subr.mxu0 0.0
        %510 = vmatpush1.msra.mxu0 0.0
        %511 = vmatprep.subr.mxu0 0.0
        %512 = vmatpush1.msra.mxu0 0.0
        %513 = vmatprep.subr.mxu0 0.0
        %514 = vmatpush1.msra.mxu0 0.0
        %515 = vmatprep.subr.mxu0 0.0
        %516 = vmatpush1.msra.mxu0 0.0
        %517 = vmatprep.subr.mxu0 0.0
        %518 = vmatpush1.msra.mxu0 0.0
        %519 = vmatprep.subr.mxu0 0.0
        %520 = vmatpush1.msra.mxu0 0.0
        %521 = vmatprep.subr.mxu0 0.0
        %522 = vmatpush1.msra.mxu0 0.0
        %523 = vmatprep.mubr.f32.mxu0 0.0
        %524 = vmatmul.mubr.f32.gmra.mrb[0].mxu0 %v457
        %v525 = vpop.f32.mrb[0].mxu0
        %v526 = vadd.f32 %v454, %v525
        %v527 = vpop.f32.mrb[0].mxu0
        %528 = vdwg.mxu0
        %v529 = vadd.f32 %v446, %v526
        %v530 = vxor.u32 %v529, 2147483648
        %v531 = vmul.f32 %v530, 1.442695
        %v532 = vpow.pop %v531
        %v533 = vadd.f32 %v532, 1.0
        %v534 = vrcp.pop %v533
        %v535 = vmul.f32 1.0, %v534
        %537 = vrot.lane.b32.xlu0 %v526, 64
        %v538 = vpop.permute.xlu0 %537
        %v540 = vmul.f32 %v535, %v538
        %542 = vrot.lane.b32.xlu0 %v540, 64
        %v543 = vpop.permute.xlu0 %542
        %v545 = vadd.f32 %v446, %v543
        %v546 = vtanh.pop %v545
        %v547 = vsub.f32 1.0, %v535
        %549 = vrot.lane.b32.xlu0 %v546, 96
        %v550 = vpop.permute.xlu0 %549
        %v552 = vmul.f32 %v547, %v550
        %553 = vrot.lane.b32.xlu0 %v274, 32
        %v554 = vpop.permute.xlu0 %553
        %v556 = vmul.f32 %v535, %v554
        %v557 = vadd.f32 %v552, %v556
        %v558 = vld [vmem:[#allocation8 + $0x18] sm:$0xff]
        %v559 = vld [vmem:[#allocation8 + $0x48] sm:$0xff]
        %v560 = vld [vmem:[#allocation8 + $0x78] sm:$0xff]
        %v561 = vld [vmem:[#allocation8 + $0xa8] sm:$0xff]
        %v562 = vld [vmem:[#allocation8 + $0x20] sm:$0xff]
        %v563 = vld [vmem:[#allocation8 + $0x50] sm:$0xff]
        %v564 = vld [vmem:[%s3 + $0x3] sm:$0x1]
        %v566 = vlaneseq
        %v567 = vshrl.u32 %v566, 7
        %v568 = vsub.s32 0, %v567
        %v569 = vrot.slane %v564, %v568
        %572 = vrot.lane.b32.xlu0 %v557, 96
        %v573 = vpop.permute.xlu0 %572
        %v574 = vsel %vm286, %v573, 0
        %576 = vmatprep.subr.mxu0 0.0
        %577 = vmatpush1.msra.mxu0 %v558
        %578 = vmatprep.subr.mxu0 0.0
        %579 = vmatpush1.msra.mxu0 %v559
        %580 = vmatprep.subr.mxu0 0.0
        %581 = vmatpush1.msra.mxu0 %v560
        %582 = vmatprep.subr.mxu0 0.0
        %583 = vmatpush1.msra.mxu0 %v561
        %584 = vmatprep.subr.mxu0 0.0
        %585 = vmatpush1.msra.mxu0 0.0
        %586 = vmatprep.subr.mxu0 0.0
        %587 = vmatpush1.msra.mxu0 0.0
        %588 = vmatprep.subr.mxu0 0.0
        %589 = vmatpush1.msra.mxu0 0.0
        %590 = vmatprep.subr.mxu0 0.0
        %591 = vmatpush1.msra.mxu0 0.0
        %592 = vmatprep.subr.mxu0 0.0
        %593 = vmatpush1.msra.mxu0 0.0
        %594 = vmatprep.subr.mxu0 0.0
        %595 = vmatpush1.msra.mxu0 0.0
        %596 = vmatprep.subr.mxu0 0.0
        %597 = vmatpush1.msra.mxu0 0.0
        %598 = vmatprep.subr.mxu0 0.0
        %599 = vmatpush1.msra.mxu0 0.0
        %600 = vmatprep.subr.mxu0 0.0
        %601 = vmatpush1.msra.mxu0 0.0
        %602 = vmatprep.subr.mxu0 0.0
        %603 = vmatpush1.msra.mxu0 0.0
        %604 = vmatprep.subr.mxu0 0.0
        %605 = vmatpush1.msra.mxu0 0.0
        %606 = vmatprep.subr.mxu0 0.0
        %607 = vmatpush1.msra.mxu0 0.0
        %608 = vmatprep.subr.mxu0 0.0
        %609 = vmatpush1.msra.mxu0 0.0
        %610 = vmatprep.subr.mxu0 0.0
        %611 = vmatpush1.msra.mxu0 0.0
        %612 = vmatprep.subr.mxu0 0.0
        %613 = vmatpush1.msra.mxu0 0.0
        %614 = vmatprep.subr.mxu0 0.0
        %615 = vmatpush1.msra.mxu0 0.0
        %616 = vmatprep.subr.mxu0 0.0
        %617 = vmatpush1.msra.mxu0 0.0
        %618 = vmatprep.subr.mxu0 0.0
        %619 = vmatpush1.msra.mxu0 0.0
        %620 = vmatprep.subr.mxu0 0.0
        %621 = vmatpush1.msra.mxu0 0.0
        %622 = vmatprep.subr.mxu0 0.0
        %623 = vmatpush1.msra.mxu0 0.0
        %624 = vmatprep.subr.mxu0 0.0
        %625 = vmatpush1.msra.mxu0 0.0
        %626 = vmatprep.subr.mxu0 0.0
        %627 = vmatpush1.msra.mxu0 0.0
        %628 = vmatprep.subr.mxu0 0.0
        %629 = vmatpush1.msra.mxu0 0.0
        %630 = vmatprep.subr.mxu0 0.0
        %631 = vmatpush1.msra.mxu0 0.0
        %632 = vmatprep.subr.mxu0 0.0
        %633 = vmatpush1.msra.mxu0 0.0
        %634 = vmatprep.subr.mxu0 0.0
        %635 = vmatpush1.msra.mxu0 0.0
        %636 = vmatprep.subr.mxu0 0.0
        %637 = vmatpush1.msra.mxu0 0.0
        %638 = vmatprep.subr.mxu0 0.0
        %639 = vmatpush1.msra.mxu0 0.0
        %640 = vmatprep.mubr.f32.mxu0 0.0
        %641 = vmatmul.mubr.f32.gmra.mrb[0].mxu0 %v574
        %v642 = vpop.f32.mrb[0].mxu0
        %v643 = vadd.f32 %v569, %v642
        %v644 = vpop.f32.mrb[0].mxu0
        %645 = vdwg.mxu0
        %v646 = vmax.f32 %v643, 0.0
        %v647 = vld [vmem:[%s3 + $0x4] sm:$0x1]
        %v649 = vlaneseq
        %v650 = vshrl.u32 %v649, 7
        %v651 = vsub.s32 0, %v650
        %v652 = vrot.slane %v647, %v651
        %vm654 = vcmask 130048
        %v656 = vsel %vm654, %v646, 0
        %658 = vmatprep.subr.mxu0 0.0
        %659 = vmatpush1.msra.mxu0 %v562
        %660 = vmatprep.subr.mxu0 0.0
        %661 = vmatpush1.msra.mxu0 %v563
        %662 = vmatprep.subr.mxu0 0.0
        %663 = vmatpush1.msra.mxu0 0.0
        %664 = vmatprep.subr.mxu0 0.0
        %665 = vmatpush1.msra.mxu0 0.0
        %666 = vmatprep.subr.mxu0 0.0
        %667 = vmatpush1.msra.mxu0 0.0
        %668 = vmatprep.subr.mxu0 0.0
        %669 = vmatpush1.msra.mxu0 0.0
        %670 = vmatprep.subr.mxu0 0.0
        %671 = vmatpush1.msra.mxu0 0.0
        %672 = vmatprep.subr.mxu0 0.0
        %673 = vmatpush1.msra.mxu0 0.0
        %674 = vmatprep.subr.mxu0 0.0
        %675 = vmatpush1.msra.mxu0 0.0
        %676 = vmatprep.subr.mxu0 0.0
        %677 = vmatpush1.msra.mxu0 0.0
        %678 = vmatprep.subr.mxu0 0.0
        %679 = vmatpush1.msra.mxu0 0.0
        %680 = vmatprep.subr.mxu0 0.0
        %681 = vmatpush1.msra.mxu0 0.0
        %682 = vmatprep.subr.mxu0 0.0
        %683 = vmatpush1.msra.mxu0 0.0
        %684 = vmatprep.subr.mxu0 0.0
        %685 = vmatpush1.msra.mxu0 0.0
        %686 = vmatprep.subr.mxu0 0.0
        %687 = vmatpush1.msra.mxu0 0.0
        %688 = vmatprep.subr.mxu0 0.0
        %689 = vmatpush1.msra.mxu0 0.0
        %690 = vmatprep.subr.mxu0 0.0
        %691 = vmatpush1.msra.mxu0 0.0
        %692 = vmatprep.subr.mxu0 0.0
        %693 = vmatpush1.msra.mxu0 0.0
        %694 = vmatprep.subr.mxu0 0.0
        %695 = vmatpush1.msra.mxu0 0.0
        %696 = vmatprep.subr.mxu0 0.0
        %697 = vmatpush1.msra.mxu0 0.0
        %698 = vmatprep.subr.mxu0 0.0
        %699 = vmatpush1.msra.mxu0 0.0
        %700 = vmatprep.subr.mxu0 0.0
        %701 = vmatpush1.msra.mxu0 0.0
        %702 = vmatprep.subr.mxu0 0.0
        %703 = vmatpush1.msra.mxu0 0.0
        %704 = vmatprep.subr.mxu0 0.0
        %705 = vmatpush1.msra.mxu0 0.0
        %706 = vmatprep.subr.mxu0 0.0
        %707 = vmatpush1.msra.mxu0 0.0
        %708 = vmatprep.subr.mxu0 0.0
        %709 = vmatpush1.msra.mxu0 0.0
        %710 = vmatprep.subr.mxu0 0.0
        %711 = vmatpush1.msra.mxu0 0.0
        %712 = vmatprep.subr.mxu0 0.0
        %713 = vmatpush1.msra.mxu0 0.0
        %714 = vmatprep.subr.mxu0 0.0
        %715 = vmatpush1.msra.mxu0 0.0
        %716 = vmatprep.subr.mxu0 0.0
        %717 = vmatpush1.msra.mxu0 0.0
        %718 = vmatprep.subr.mxu0 0.0
        %719 = vmatpush1.msra.mxu0 0.0
        %720 = vmatprep.subr.mxu0 0.0
        %721 = vmatpush1.msra.mxu0 0.0
        %722 = vmatprep.mubr.f32.mxu0 0.0
        %723 = vmatmul.mubr.f32.gmra.mrb[0].mxu0 %v656
        %v724 = vpop.f32.mrb[0].mxu0
        %v725 = vadd.f32 %v652, %v724
        %v726 = vpop.f32.mrb[0].mxu0
        %727 = vdwg.mxu0
        %v728 = vld [vmem:[#allocation8 + $0x28] sm:$0xff]
        %v729 = vld [vmem:[#allocation8 + $0x58] sm:$0xff]
        %v730 = vld [vmem:[#allocation8 + $0x88] sm:$0xff]
        %v731 = vld [vmem:[#allocation8 + $0xb8] sm:$0xff]
        %v732 = vld [vmem:[%s3 + $0x5] sm:$0x1]
        %v734 = vlaneseq
        %v735 = vshrl.u32 %v734, 7
        %v736 = vsub.s32 0, %v735
        %v737 = vrot.slane %v732, %v736
        %739 = vmatprep.subr.mxu0 0.0
        %740 = vmatpush1.msra.mxu0 %v728
        %741 = vmatprep.subr.mxu0 0.0
        %742 = vmatpush1.msra.mxu0 %v729
        %743 = vmatprep.subr.mxu0 0.0
        %744 = vmatpush1.msra.mxu0 %v730
        %745 = vmatprep.subr.mxu0 0.0
        %746 = vmatpush1.msra.mxu0 %v731
        %747 = vmatprep.subr.mxu0 0.0
        %748 = vmatpush1.msra.mxu0 0.0
        %749 = vmatprep.subr.mxu0 0.0
        %750 = vmatpush1.msra.mxu0 0.0
        %751 = vmatprep.subr.mxu0 0.0
        %752 = vmatpush1.msra.mxu0 0.0
        %753 = vmatprep.subr.mxu0 0.0
        %754 = vmatpush1.msra.mxu0 0.0
        %755 = vmatprep.subr.mxu0 0.0
        %756 = vmatpush1.msra.mxu0 0.0
        %757 = vmatprep.subr.mxu0 0.0
        %758 = vmatpush1.msra.mxu0 0.0
        %759 = vmatprep.subr.mxu0 0.0
        %760 = vmatpush1.msra.mxu0 0.0
        %761 = vmatprep.subr.mxu0 0.0
        %762 = vmatpush1.msra.mxu0 0.0
        %763 = vmatprep.subr.mxu0 0.0
        %764 = vmatpush1.msra.mxu0 0.0
        %765 = vmatprep.subr.mxu0 0.0
        %766 = vmatpush1.msra.mxu0 0.0
        %767 = vmatprep.subr.mxu0 0.0
        %768 = vmatpush1.msra.mxu0 0.0
        %769 = vmatprep.subr.mxu0 0.0
        %770 = vmatpush1.msra.mxu0 0.0
        %771 = vmatprep.subr.mxu0 0.0
        %772 = vmatpush1.msra.mxu0 0.0
        %773 = vmatprep.subr.mxu0 0.0
        %774 = vmatpush1.msra.mxu0 0.0
        %775 = vmatprep.subr.mxu0 0.0
        %776 = vmatpush1.msra.mxu0 0.0
        %777 = vmatprep.subr.mxu0 0.0
        %778 = vmatpush1.msra.mxu0 0.0
        %779 = vmatprep.subr.mxu0 0.0
        %780 = vmatpush1.msra.mxu0 0.0
        %781 = vmatprep.subr.mxu0 0.0
        %782 = vmatpush1.msra.mxu0 0.0
        %783 = vmatprep.subr.mxu0 0.0
        %784 = vmatpush1.msra.mxu0 0.0
        %785 = vmatprep.subr.mxu0 0.0
        %786 = vmatpush1.msra.mxu0 0.0
        %787 = vmatprep.subr.mxu0 0.0
        %788 = vmatpush1.msra.mxu0 0.0
        %789 = vmatprep.subr.mxu0 0.0
        %790 = vmatpush1.msra.mxu0 0.0
        %791 = vmatprep.subr.mxu0 0.0
        %792 = vmatpush1.msra.mxu0 0.0
        %793 = vmatprep.subr.mxu0 0.0
        %794 = vmatpush1.msra.mxu0 0.0
        %795 = vmatprep.subr.mxu0 0.0
        %796 = vmatpush1.msra.mxu0 0.0
        %797 = vmatprep.subr.mxu0 0.0
        %798 = vmatpush1.msra.mxu0 0.0
        %799 = vmatprep.subr.mxu0 0.0
        %800 = vmatpush1.msra.mxu0 0.0
        %801 = vmatprep.subr.mxu0 0.0
        %802 = vmatpush1.msra.mxu0 0.0
        %803 = vmatprep.mubr.f32.mxu0 0.0
        %804 = vmatmul.mubr.f32.gmra.mrb[0].mxu0 %v574
        %v805 = vpop.f32.mrb[0].mxu0
        %v806 = vadd.f32 %v737, %v805
        %v807 = vpop.f32.mrb[0].mxu0
        %808 = vdwg.mxu0
        %v809 = vmax.f32 %v806, 0.0
        %v810 = vand.u32 2147483647, %v806
        %v811 = vsub.f32 0.0, %v810
        %v812 = vmul.f32 %v811, 1.442695
        %v813 = vpow.pop %v812
        %v814 = vadd.f32 %v813, 1.0
        %v815 = vlog2.pop %v814
        %v816 = vmul.f32 %v815, 0.6931472
        %v817 = vmul.f32 -0.5, %v813
        %v818 = vadd.f32 %v817, 1.0
        %v819 = vmul.f32 %v818, %v813
        %v820 = vand.u32 2147483647, %v813
        %vm821 = vcmp.lt.f32.partialorder %v820, 0.0004427343
        %v822 = vsel %vm821, %v819, %v816
        %v823 = vadd.f32 %v809, %v822
        %v824 = vadd.f32 %v823, 0.05
        %826 = vrot.lane.b32.xlu0 %v824, 6
        %v827 = vpop.permute.xlu0 %826
        %vm829 = vcmask 48128
        %v830 = vsel %vm829, %v725, %v827
        %vm831 = vcmask 97280
        %832 = vst.msk [vmem:[%s263] sm:$0xff] %vm831, %v830
        %834 = vst.msk [vmem:[#allocation2] sm:$0xff] %vm286, %v573
        %835 = vst.msk [vmem:[#allocation10] sm:$0xff] %vm286, %v573
        %s836 = sand.u32 %s122, 1
        %s837 = scalar_lea.sflag [#allocation5], %s836
        %s838 = sand.u32 %s122, 1
        %s839 = smul.addr %s838, 8
        %s840 = scalar_lea.vmem [#allocation9], %s839
        // Predicated region
        $region53: #{tpu_custom_call.1} parent=35 // pred_check
          %p841 = pneg %p132
        $region54: #{tpu_custom_call.1} parent=35 // pred_check_branch
          %843 = sbr.rel (%p841) target = $region56
        $region55: #{tpu_custom_call.1} parent=35 // pred_region
          %s845 = ssub.s32 128, 128
          %846 = vsyncadd %s837, %s845
          %s847 = smul.addr %s25, 128
          %s848 = scalar_lea.hbm %s4, %s847
          %s850 = sshll.u32 %s840, 4
          %s851 = int_to_ptr.vmem [resolvable:$true] %s850
          %853 = dma.vmem_to_hbm [thread:$0]  %s851, 128, %s848, %s837
        $region56: #{tpu_custom_call.1} parent=35 // pred_fallthru
          _
        // Predicated region
        $region57: #{tpu_custom_call.1} parent=35 // pred_check
          %p854 = pneg %p153
        $region58: #{tpu_custom_call.1} parent=35 // pred_check_branch
          %856 = sbr.rel (%p854) target = $region60
        $region59: #{tpu_custom_call.1} parent=35 // pred_region
          %s858 = ssub.s32 128, 128
          %859 = vsyncadd [#allocation11], %s858
          %s861 = sshll.u32 [#allocation10], 4
          %s862 = int_to_ptr.vmem [resolvable:$true] %s861
          %864 = dma.vmem_to_hbm [thread:$0]  %s862, 128, %s5, [#allocation11]
        $region60: #{tpu_custom_call.1} parent=35 // pred_fallthru
          _
        // Predicated region
        $region61: #{tpu_custom_call.1} parent=35 // pred_check
          %p865 = pneg %p153
        $region62: #{tpu_custom_call.1} parent=35 // pred_check_branch
          %867 = sbr.rel (%p865) target = $region64
        $region63: #{tpu_custom_call.1} parent=35 // pred_region
          %868 = dma.done [#allocation11], 128
        $region64: #{tpu_custom_call.1} parent=35 // pred_fallthru
          _
      $region36: #{tpu_custom_call.1} parent=5 // pred_fallthru
        _
      %p869 = scmp.le.s32.totalorder 2, %s20
      // Predicated region
      $region65: #{tpu_custom_call.1} parent=5 // pred_check
        %p870 = pneg %p869
      $region66: #{tpu_custom_call.1} parent=5 // pred_check_branch
        %872 = sbr.rel (%p870) target = $region68
      $region67: #{tpu_custom_call.1} parent=5 // pred_region
        %s873 = ssub.s32 %s20, 2
        // Predicated region
        $region69: #{tpu_custom_call.1} parent=67 // pred_check
          %p874 = pneg %p138
        $region70: #{tpu_custom_call.1} parent=67 // pred_check_branch
          %876 = sbr.rel (%p874) target = $region72
        $region71: #{tpu_custom_call.1} parent=67 // pred_region
          %s877 = sand.u32 %s123, 1
          %s878 = scalar_lea.sflag [#allocation5], %s877
          %s879 = sand.u32 %s123, 1
          %s880 = smul.addr %s879, 8
          %s881 = scalar_lea.vmem [#allocation9], %s880
          %882 = dma.done %s878, 128
        $region72: #{tpu_custom_call.1} parent=67 // pred_fallthru
          _
      $region68: #{tpu_custom_call.1} parent=5 // pred_fallthru
        _
    $region6: #{tpu_custom_call.1} parent=1 // loop_footer
      %s24 = sadd.s32 1, %s20
    $region7: #{tpu_custom_call.1} parent=1 // loop_footer_branch
      %19 = sbr.rel target = $region3
    $region8: #{tpu_custom_call.1} parent=1 // loop_exit
      _
    %883 = vsyncpa [#allocation4], 1
    %s884 = scalar_lea.sflag [#allocation4], 1
    %885 = vsyncpa %s884, 1
    %886 = vsyncpa [#allocation7], 1
    %887 = vsyncpa [#allocation5], 1
    %s888 = scalar_lea.sflag [#allocation5], 1
    %889 = vsyncpa %s888, 1
    %890 = vsyncpa [#allocation11], 1

</llo_original>
